<compile_context>
chip_gen: v5e
topology: v5e:2x2
jax: 0.10.0
libtpu: 0.0.40
codegen_flags: <defaults>
</compile_context>

<pallas_src>
import functools
import math

import jax
import jax.numpy as jnp
from jax.experimental import pallas as pl
from jax.experimental.pallas import tpu as pltpu

_LANE = 128            # lane width (last-dim tiling unit)
_SUB = 8               # sublane width (second-to-last tiling unit)
_TM_CAP = 256          # sublane-axis tile cap
_TN_CAP = 2048         # lane-axis tile cap (keep stores lane-dense)
_LAYOUT_N_CAP = 2048   # lane width cap when re-flattening B*C*H*W
_TB_CAP = 32           # max time steps unrolled per grid step (code-size bound)


def _round_up(x: int, m: int) -> int:
    return (x + m - 1) // m * m


def _vmem_budget_and_limit():
    """Generation-aware VMEM sizing.

    v5e / v6e have 128 MiB physical VMEM per core -> plan 48 MiB of block
    buffers and request a 64 MiB scoped limit (the v5e default limit is only
    16 MiB, below this kernel's working set). v7x has 64 MiB per TensorCore
    (also the conservative fallback if the query fails) -> 36 / 48 MiB.
    """
    try:
        cap = int(getattr(pltpu.get_tpu_info(), "vmem_capacity_bytes", 0))
    except Exception:  # pragma: no cover - defensive; query is best-effort
        cap = 0
    if cap >= (96 << 20):
        return 48 << 20, 64 << 20
    return 36 << 20, 48 << 20


def _if_neuron_kernel(params_ref, x_ref, out_ref, mem_ref, *, tb: int):
    """One grid step: tb time steps over one (tm, tn) spatial tile.

    params_ref : SMEM (2,) f32  -> [threshold, reset]
    x_ref      : VMEM (tb, tm, tn) input block
    out_ref    : VMEM (tb, tm, tn) spike block (dtype = spike_dtype)
    mem_ref    : VMEM (tm, tn) f32 membrane state; persists across the time
                 grid axis, re-initialized at t == 0 for each spatial tile.
    """
    threshold = params_ref[0]
    reset = params_ref[1]

    # New spatial tile begins -> reset membrane state.
    @pl.when(pl.program_id(2) == 0)
    def _():
        mem_ref[...] = jnp.zeros_like(mem_ref)

    # Carry the membrane across the statically unrolled time steps: one
    # explicit mem_ref load here and one store at the end. For large tiles
    # Mosaic spills the carry to VMEM between steps; that VMEM traffic is
    # hidden under the HBM DMA (the kernel is bandwidth bound).
    mem = mem_ref[...]
    for t in range(tb):                                   # static unroll, tb <= _TB_CAP
        mem = mem + x_ref[t].astype(jnp.float32)          # integrate
        fired = mem >= threshold                          # fire
        out_ref[t] = fired.astype(out_ref.dtype)          # emit spikes
        mem = jnp.where(fired, reset, mem)                # hard reset
    mem_ref[...] = mem


def _choose_layout(S: int, n_cap: int = _LAYOUT_N_CAP):
    """Factor the flattened per-step slab of S elements into (M, N, pad).

    N is always a multiple of 128 (lane-dense, unmasked stores); when possible
    M is a multiple of 8 (full (8, 128) vreg utilisation). Only when S has no
    multiple-of-128 divisor do we pad with trailing zeros (padded elements are
    independent and sliced off the output).
    """
    S_eff = S if S % _LANE == 0 else _round_up(S, _SUB * _LANE)
    best = None  # key = (M is a multiple of 8, N)  -- maximize
    n = _LANE
    hi = min(S_eff, n_cap)
    while n <= hi:
        if S_eff % n == 0:
            key = ((S_eff // n) % _SUB == 0, n)
            if best is None or key > best:
                best = key
        n += _LANE
    N = best[1]          # n = 128 is always a candidate, so best is not None
    M = S_eff // N
    return M, N, S_eff - S


def _pick_tile(dim: int, unit: int, cap: int) -> int:
    """Largest divisor of `dim` that is a multiple of `unit` and <= cap.

    If dim is not a multiple of `unit`, the only legal choice under the
    (8, 128) block-shape rule is a full-extent block (== dim).
    """
    if dim % unit != 0:
        return dim
    best = unit
    d = unit
    hi = max(unit, min(cap, dim))
    while d <= hi:
        if dim % d == 0:
            best = d
        d += unit
    return best


def _ensure_megacore_tiles(M: int, N: int, tm: int, tn: int):
    """Shrink spatial tiles until there are >= 2 independent 'parallel' tiles.

    The time axis is sequential ('arbitrary') and cannot shard, so a single
    spatial tile would leave one of v7x's two TensorCores idle. Prefer
    splitting the lane axis (never below 128 lanes), then the sublane axis.
    """
    if (M // tm) * (N // tn) >= 2:
        return tm, tn
    if N // tn < 2 and tn >= 2 * _LANE:
        cand = _pick_tile(N, _LANE, tn // 2)
        if N // cand >= 2:
            tn = cand
    if (M // tm) * (N // tn) < 2 and M % _SUB == 0 and tm >= 2 * _SUB:
        cand = _pick_tile(M, _SUB, tm // 2)
        if M // cand >= 2:
            tm = cand
    return tm, tn


def _pick_time_block(T: int, per_step_bytes: int, budget_bytes: int, cap: int) -> int:
    """Largest time block <= cap that fits the VMEM budget, preferring an
    exact divisor of T (no time padding) unless that would be much smaller
    than the budget allows."""
    tb_max = 1
    hi = max(1, min(T, cap))
    for tb in range(1, hi + 1):
        if tb * per_step_bytes <= budget_bytes:
            tb_max = tb
    best_div = 1
    for tb in range(1, tb_max + 1):
        if T % tb == 0:
            best_div = tb
    return best_div if 2 * best_div >= tb_max else tb_max


def _run_multistep(x_tmn: jax.Array, params: jax.Array, spike_dtype) -> jax.Array:
    """x_tmn: [T, M, N] with N % 128 == 0. Returns spikes [T, M, N]."""
    T, M, N = x_tmn.shape
    budget_bytes, limit_bytes = _vmem_budget_and_limit()

    tm = _pick_tile(M, _SUB, _TM_CAP)
    tn = _pick_tile(N, _LANE, _TN_CAP)
    tm, tn = _ensure_megacore_tiles(M, N, tm, tn)

    in_b = jnp.dtype(x_tmn.dtype).itemsize
    out_b = jnp.dtype(spike_dtype).itemsize
    scratch_bytes = tm * tn * 4                       # f32 membrane scratch
    per_step_bytes = tm * tn * 2 * (in_b + out_b)     # double-buffered in + out blocks
    tb = _pick_time_block(T, per_step_bytes, budget_bytes - scratch_bytes, _TB_CAP)

    T_pad = _round_up(T, tb)
    if T_pad != T:
        # Padded (trailing) time steps read zeros; their spikes are sliced off
        # below and they never influence the real outputs.
        x_tmn = jnp.pad(x_tmn, ((0, T_pad - T), (0, 0), (0, 0)))

    grid = (M // tm, N // tn, T_pad // tb)
    kernel = functools.partial(_if_neuron_kernel, tb=tb)

    out = pl.pallas_call(
        kernel,
        out_shape=jax.ShapeDtypeStruct((T_pad, M, N), spike_dtype),
        grid_spec=pltpu.PrefetchScalarGridSpec(
            num_scalar_prefetch=0,
            grid=grid,
            in_specs=[
                # [threshold, reset] lives whole in SMEM; value changes do not
                # retrigger a Mosaic compile.
                pl.BlockSpec(memory_space=pltpu.MemorySpace.SMEM),
                pl.BlockSpec((tb, tm, tn), lambda i, j, t: (t, i, j)),
            ],
            out_specs=pl.BlockSpec((tb, tm, tn), lambda i, j, t: (t, i, j)),
            scratch_shapes=[pltpu.VMEM((tm, tn), jnp.float32)],
        ),
        compiler_params=pltpu.CompilerParams(
            # Spatial tiles are independent (megacore shardable); the time axis
            # carries the membrane recurrence -> sequential and innermost.
            dimension_semantics=("parallel", "parallel", "arbitrary"),
            vmem_limit_bytes=limit_bytes,
        ),
        # Advisory hint so XLA schedules surrounding ops around this
        # bandwidth-bound custom call correctly.
        cost_estimate=pl.CostEstimate(
            flops=4 * T_pad * M * N,
            transcendentals=0,
            bytes_accessed=T_pad * M * N * (in_b + out_b) + M * N * 4,
        ),
    )(params, x_tmn)

    return out[:T] if T_pad != T else out


class BaseNodePallas:
    """JAX/Pallas equivalent of the PyTorch BaseNode forward pass (IF update).

    HBM-traffic knobs (the kernel is bandwidth bound on every generation):
      * spike_dtype=jnp.int8 (or jnp.bfloat16) cuts spike writeback from 4 B to
        1 B (2 B) per element per step (~35-40% / ~25% wall clock).
      * Supplying bf16 activations halves read traffic; the kernel casts to
        f32 internally, so only the caller changes.
    The defaults keep the input dtype so outputs match PyTorch exactly.
    """

    def __init__(self, threshold: float = 1.0, reset: float = 0.0,
                 surrogate_alpha: float = 4.0, spike_dtype=None) -> None:
        self.threshold = float(threshold)
        self.reset = float(reset)
        self.surrogate_alpha = float(surrogate_alpha)  # forward-unused (surrogate grad only)
        self.spike_dtype = spike_dtype
        self._params = jnp.array([self.threshold, self.reset], dtype=jnp.float32)

    def __call__(self, x: jax.Array) -> jax.Array:
        # Single-step input [B, C, H, W]: treat as T=1 and squeeze.
        if x.ndim == 4:
            return self(x[None])[0]
        assert x.ndim == 5, "expected [B,C,H,W] or [T,B,C,H,W]"
        T = x.shape[0]
        S = math.prod(x.shape[1:])
        spike_dtype = x.dtype if self.spike_dtype is None else self.spike_dtype

        # The update is elementwise over B,C,H,W, so re-flatten the per-step
        # slab into a kernel-friendly lane-dense (M, N) shape, padding with
        # zeros only for awkward shapes (e.g. H*W = 49).
        M, N, pad_s = _choose_layout(S)
        x_flat = x.reshape(T, S)
        if pad_s:
            x_flat = jnp.pad(x_flat, ((0, 0), (0, pad_s)))

        out = _run_multistep(x_flat.reshape(T, M, N), self._params, spike_dtype)
        out = out.reshape(T, M * N)
        if pad_s:
            out = out[:, :S]
        return out.reshape(x.shape)


def _reference(x: jax.Array, threshold: float, reset: float) -> jax.Array:
    """Pure-JAX reference for the same semantics."""
    if x.ndim == 4:
        x = x[None]
        squeeze = True
    else:
        squeeze = False

    def step(mem, x_t):
        mem_new = mem + x_t.astype(jnp.float32)
        fired = mem_new >= threshold
        spike = fired.astype(x_t.dtype)
        mem = jnp.where(fired, jnp.float32(reset), mem_new)
        return mem, spike

    mem0 = jnp.zeros(x.shape[1:], jnp.float32)
    _, out = jax.lax.scan(step, mem0, x)
    return out[0] if squeeze else out


if __name__ == "__main__":
    key = jax.random.PRNGKey(0)
    T, B, C, H, W = 8, 2, 4, 16, 16           # multi-step: x.dim() == mem.dim() + 1
    x_multi = jax.random.normal(key, (T, B, C, H, W), dtype=jnp.float32)
    x_single = x_multi[0]                     # single-step path [B, C, H, W]

    node = BaseNodePallas(threshold=1.0, reset=0.0, surrogate_alpha=4.0)

    # 1) Multi-step and single-step, default (input) dtype -> exact PyTorch parity.
    out_multi = jax.block_until_ready(node(x_multi))
    out_single = jax.block_until_ready(node(x_single))
    assert out_multi.shape == (T, B, C, H, W)
    assert out_single.shape == (B, C, H, W)
    assert jnp.array_equal(out_multi, _reference(x_multi, node.threshold, node.reset)), \
        "multi-step mismatch"
    assert jnp.array_equal(out_single, _reference(x_single, node.threshold, node.reset)), \
        "single-step mismatch"

    # 2) bf16 activations (halved HBM read traffic; membrane still f32 in-kernel).
    x_bf16 = x_multi.astype(jnp.bfloat16)
    out_bf16 = jax.block_until_ready(node(x_bf16))
    assert out_bf16.dtype == jnp.bfloat16
    assert jnp.array_equal(out_bf16, _reference(x_bf16, node.threshold, node.reset)), \
        "bf16 mismatch"

    # 3) CNN-style awkward spatial shape (H*W = 49): exercises the pad/layout path.
    x_odd = jax.random.normal(jax.random.PRNGKey(1), (5, 2, 3, 7, 7), dtype=jnp.float32)
    out_odd = jax.block_until_ready(node(x_odd))
    assert out_odd.shape == x_odd.shape
    assert jnp.array_equal(out_odd, _reference(x_odd, node.threshold, node.reset)), \
        "odd-shape mismatch"

    print("KERNEL_OK")
</pallas_src>

<mosaic_0001>
module attributes {stable_mosaic.version = 11 : i64} {
  func.func @_if_neuron_kernel(%arg0: i32, %arg1: i32, %arg2: i32, %arg3: memref<2xf32, #tpu.memory_space<smem>>, %arg4: memref<8x8x128xf32, #tpu.memory_space<vmem>>, %arg5: memref<8x8x128xf32, #tpu.memory_space<vmem>>, %arg6: memref<8x128xf32, #tpu.memory_space<vmem>>) attributes {dimension_semantics = [#tpu.dimension_semantics<parallel>, #tpu.dimension_semantics<parallel>, #tpu.dimension_semantics<arbitrary>], iteration_bounds = array<i64: 1, 2, 1>, scalar_prefetch = 0 : i64, scratch_operands = 1 : i64, tpu.core_type = #tpu.core_type<tc>, window_params = [{transform_indices = @transform_0, window_bounds = array<i64: 2>}, {transform_indices = @transform_1, window_bounds = array<i64: 8, 8, 128>}, {transform_indices = @transform_2, window_bounds = array<i64: 8, 8, 128>}]} {
    %c0 = arith.constant 0 : index
    %0 = memref.load %arg3[%c0] : memref<2xf32, #tpu.memory_space<smem>>
    %c1 = arith.constant 1 : index
    %1 = memref.load %arg3[%c1] : memref<2xf32, #tpu.memory_space<smem>>
    %c0_i32 = arith.constant 0 : i32
    %2 = arith.cmpi eq, %arg2, %c0_i32 : i32
    %3 = arith.extui %2 : i1 to i32
    %c0_i32_0 = arith.constant 0 : i32
    %4 = arith.cmpi ne, %3, %c0_i32_0 : i32
    scf.if %4 {
      %cst = arith.constant 0.000000e+00 : f32
      %103 = vector.broadcast %cst : f32 to vector<8x128xf32>
      %c0_47 = arith.constant 0 : index
      %c0_48 = arith.constant 0 : index
      %104 = vector.load %arg6[%c0_47, %c0_48] : memref<8x128xf32, #tpu.memory_space<vmem>>, vector<8x128xf32>
      tpu.vector_store %arg6[%c0_47, %c0_48], %103 {strides = array<i32>} : memref<8x128xf32, #tpu.memory_space<vmem>>, vector<8x128xf32>,
    } else {
    }
    %c0_1 = arith.constant 0 : index
    %c0_2 = arith.constant 0 : index
    %5 = vector.load %arg6[%c0_1, %c0_2] : memref<8x128xf32, #tpu.memory_space<vmem>>, vector<8x128xf32>
    %c0_3 = arith.constant 0 : index
    %c0_4 = arith.constant 0 : index
    %c0_5 = arith.constant 0 : index
    %6 = vector.load %arg4[%c0_3, %c0_4, %c0_5] : memref<8x8x128xf32, #tpu.memory_space<vmem>>, vector<1x8x128xf32>
    %7 = vector.shape_cast %6 : vector<1x8x128xf32> to vector<8x128xf32>
    %8 = arith.addf %5, %7 : vector<8x128xf32>
    %9 = vector.broadcast %0 : f32 to vector<8x128xf32>
    %10 = arith.cmpf oge, %8, %9 : vector<8x128xf32>
    %11 = arith.extui %10 : vector<8x128xi1> to vector<8x128xi32>
    %12 = arith.sitofp %11 : vector<8x128xi32> to vector<8x128xf32>
    %c0_6 = arith.constant 0 : index
    %c0_7 = arith.constant 0 : index
    %c0_8 = arith.constant 0 : index
    %13 = vector.load %arg5[%c0_6, %c0_7, %c0_8] : memref<8x8x128xf32, #tpu.memory_space<vmem>>, vector<1x8x128xf32>
    %14 = vector.shape_cast %13 : vector<1x8x128xf32> to vector<8x128xf32>
    %15 = vector.shape_cast %12 : vector<8x128xf32> to vector<1x8x128xf32>
    tpu.vector_store %arg5[%c0_6, %c0_7, %c0_8], %15 {strides = array<i32>} : memref<8x8x128xf32, #tpu.memory_space<vmem>>, vector<1x8x128xf32>,
    %16 = vector.broadcast %1 : f32 to vector<8x128xf32>
    %17 = arith.select %10, %16, %8 : vector<8x128xi1>, vector<8x128xf32>
    %c1_9 = arith.constant 1 : index
    %c0_10 = arith.constant 0 : index
    %c0_11 = arith.constant 0 : index
    %18 = vector.load %arg4[%c1_9, %c0_10, %c0_11] : memref<8x8x128xf32, #tpu.memory_space<vmem>>, vector<1x8x128xf32>
    %19 = vector.shape_cast %18 : vector<1x8x128xf32> to vector<8x128xf32>
    %20 = arith.addf %17, %19 : vector<8x128xf32>
    %21 = vector.broadcast %0 : f32 to vector<8x128xf32>
    %22 = arith.cmpf oge, %20, %21 : vector<8x128xf32>
    %23 = arith.extui %22 : vector<8x128xi1> to vector<8x128xi32>
    %24 = arith.sitofp %23 : vector<8x128xi32> to vector<8x128xf32>
    %c1_12 = arith.constant 1 : index
    %c0_13 = arith.constant 0 : index
    %c0_14 = arith.constant 0 : index
    %25 = vector.load %arg5[%c1_12, %c0_13, %c0_14] : memref<8x8x128xf32, #tpu.memory_space<vmem>>, vector<1x8x128xf32>
    %26 = vector.shape_cast %25 : vector<1x8x128xf32> to vector<8x128xf32>
    %27 = vector.shape_cast %24 : vector<8x128xf32> to vector<1x8x128xf32>
    tpu.vector_store %arg5[%c1_12, %c0_13, %c0_14], %27 {strides = array<i32>} : memref<8x8x128xf32, #tpu.memory_space<vmem>>, vector<1x8x128xf32>,
    %28 = vector.broadcast %1 : f32 to vector<8x128xf32>
    %29 = arith.select %22, %28, %20 : vector<8x128xi1>, vector<8x128xf32>
    %c2 = arith.constant 2 : index
    %c0_15 = arith.constant 0 : index
    %c0_16 = arith.constant 0 : index
    %30 = vector.load %arg4[%c2, %c0_15, %c0_16] : memref<8x8x128xf32, #tpu.memory_space<vmem>>, vector<1x8x128xf32>
    %31 = vector.shape_cast %30 : vector<1x8x128xf32> to vector<8x128xf32>
    %32 = arith.addf %29, %31 : vector<8x128xf32>
    %33 = vector.broadcast %0 : f32 to vector<8x128xf32>
    %34 = arith.cmpf oge, %32, %33 : vector<8x128xf32>
    %35 = arith.extui %34 : vector<8x128xi1> to vector<8x128xi32>
    %36 = arith.sitofp %35 : vector<8x128xi32> to vector<8x128xf32>
    %c2_17 = arith.constant 2 : index
    %c0_18 = arith.constant 0 : index
    %c0_19 = arith.constant 0 : index
    %37 = vector.load %arg5[%c2_17, %c0_18, %c0_19] : memref<8x8x128xf32, #tpu.memory_space<vmem>>, vector<1x8x128xf32>
    %38 = vector.shape_cast %37 : vector<1x8x128xf32> to vector<8x128xf32>
    %39 = vector.shape_cast %36 : vector<8x128xf32> to vector<1x8x128xf32>
    tpu.vector_store %arg5[%c2_17, %c0_18, %c0_19], %39 {strides = array<i32>} : memref<8x8x128xf32, #tpu.memory_space<vmem>>, vector<1x8x128xf32>,
    %40 = vector.broadcast %1 : f32 to vector<8x128xf32>
    %41 = arith.select %34, %40, %32 : vector<8x128xi1>, vector<8x128xf32>
    %c3 = arith.constant 3 : index
    %c0_20 = arith.constant 0 : index
    %c0_21 = arith.constant 0 : index
    %42 = vector.load %arg4[%c3, %c0_20, %c0_21] : memref<8x8x128xf32, #tpu.memory_space<vmem>>, vector<1x8x128xf32>
    %43 = vector.shape_cast %42 : vector<1x8x128xf32> to vector<8x128xf32>
    %44 = arith.addf %41, %43 : vector<8x128xf32>
    %45 = vector.broadcast %0 : f32 to vector<8x128xf32>
    %46 = arith.cmpf oge, %44, %45 : vector<8x128xf32>
    %47 = arith.extui %46 : vector<8x128xi1> to vector<8x128xi32>
    %48 = arith.sitofp %47 : vector<8x128xi32> to vector<8x128xf32>
    %c3_22 = arith.constant 3 : index
    %c0_23 = arith.constant 0 : index
    %c0_24 = arith.constant 0 : index
    %49 = vector.load %arg5[%c3_22, %c0_23, %c0_24] : memref<8x8x128xf32, #tpu.memory_space<vmem>>, vector<1x8x128xf32>
    %50 = vector.shape_cast %49 : vector<1x8x128xf32> to vector<8x128xf32>
    %51 = vector.shape_cast %48 : vector<8x128xf32> to vector<1x8x128xf32>
    tpu.vector_store %arg5[%c3_22, %c0_23, %c0_24], %51 {strides = array<i32>} : memref<8x8x128xf32, #tpu.memory_space<vmem>>, vector<1x8x128xf32>,
    %52 = vector.broadcast %1 : f32 to vector<8x128xf32>
    %53 = arith.select %46, %52, %44 : vector<8x128xi1>, vector<8x128xf32>
    %c4 = arith.constant 4 : index
    %c0_25 = arith.constant 0 : index
    %c0_26 = arith.constant 0 : index
    %54 = vector.load %arg4[%c4, %c0_25, %c0_26] : memref<8x8x128xf32, #tpu.memory_space<vmem>>, vector<1x8x128xf32>
    %55 = vector.shape_cast %54 : vector<1x8x128xf32> to vector<8x128xf32>
    %56 = arith.addf %53, %55 : vector<8x128xf32>
    %57 = vector.broadcast %0 : f32 to vector<8x128xf32>
    %58 = arith.cmpf oge, %56, %57 : vector<8x128xf32>
    %59 = arith.extui %58 : vector<8x128xi1> to vector<8x128xi32>
    %60 = arith.sitofp %59 : vector<8x128xi32> to vector<8x128xf32>
    %c4_27 = arith.constant 4 : index
    %c0_28 = arith.constant 0 : index
    %c0_29 = arith.constant 0 : index
    %61 = vector.load %arg5[%c4_27, %c0_28, %c0_29] : memref<8x8x128xf32, #tpu.memory_space<vmem>>, vector<1x8x128xf32>
    %62 = vector.shape_cast %61 : vector<1x8x128xf32> to vector<8x128xf32>
    %63 = vector.shape_cast %60 : vector<8x128xf32> to vector<1x8x128xf32>
    tpu.vector_store %arg5[%c4_27, %c0_28, %c0_29], %63 {strides = array<i32>} : memref<8x8x128xf32, #tpu.memory_space<vmem>>, vector<1x8x128xf32>,
    %64 = vector.broadcast %1 : f32 to vector<8x128xf32>
    %65 = arith.select %58, %64, %56 : vector<8x128xi1>, vector<8x128xf32>
    %c5 = arith.constant 5 : index
    %c0_30 = arith.constant 0 : index
    %c0_31 = arith.constant 0 : index
    %66 = vector.load %arg4[%c5, %c0_30, %c0_31] : memref<8x8x128xf32, #tpu.memory_space<vmem>>, vector<1x8x128xf32>
    %67 = vector.shape_cast %66 : vector<1x8x128xf32> to vector<8x128xf32>
    %68 = arith.addf %65, %67 : vector<8x128xf32>
    %69 = vector.broadcast %0 : f32 to vector<8x128xf32>
    %70 = arith.cmpf oge, %68, %69 : vector<8x128xf32>
    %71 = arith.extui %70 : vector<8x128xi1> to vector<8x128xi32>
    %72 = arith.sitofp %71 : vector<8x128xi32> to vector<8x128xf32>
    %c5_32 = arith.constant 5 : index
    %c0_33 = arith.constant 0 : index
    %c0_34 = arith.constant 0 : index
    %73 = vector.load %arg5[%c5_32, %c0_33, %c0_34] : memref<8x8x128xf32, #tpu.memory_space<vmem>>, vector<1x8x128xf32>
    %74 = vector.shape_cast %73 : vector<1x8x128xf32> to vector<8x128xf32>
    %75 = vector.shape_cast %72 : vector<8x128xf32> to vector<1x8x128xf32>
    tpu.vector_store %arg5[%c5_32, %c0_33, %c0_34], %75 {strides = array<i32>} : memref<8x8x128xf32, #tpu.memory_space<vmem>>, vector<1x8x128xf32>,
    %76 = vector.broadcast %1 : f32 to vector<8x128xf32>
    %77 = arith.select %70, %76, %68 : vector<8x128xi1>, vector<8x128xf32>
    %c6 = arith.constant 6 : index
    %c0_35 = arith.constant 0 : index
    %c0_36 = arith.constant 0 : index
    %78 = vector.load %arg4[%c6, %c0_35, %c0_36] : memref<8x8x128xf32, #tpu.memory_space<vmem>>, vector<1x8x128xf32>
    %79 = vector.shape_cast %78 : vector<1x8x128xf32> to vector<8x128xf32>
    %80 = arith.addf %77, %79 : vector<8x128xf32>
    %81 = vector.broadcast %0 : f32 to vector<8x128xf32>
    %82 = arith.cmpf oge, %80, %81 : vector<8x128xf32>
    %83 = arith.extui %82 : vector<8x128xi1> to vector<8x128xi32>
    %84 = arith.sitofp %83 : vector<8x128xi32> to vector<8x128xf32>
    %c6_37 = arith.constant 6 : index
    %c0_38 = arith.constant 0 : index
    %c0_39 = arith.constant 0 : index
    %85 = vector.load %arg5[%c6_37, %c0_38, %c0_39] : memref<8x8x128xf32, #tpu.memory_space<vmem>>, vector<1x8x128xf32>
    %86 = vector.shape_cast %85 : vector<1x8x128xf32> to vector<8x128xf32>
    %87 = vector.shape_cast %84 : vector<8x128xf32> to vector<1x8x128xf32>
    tpu.vector_store %arg5[%c6_37, %c0_38, %c0_39], %87 {strides = array<i32>} : memref<8x8x128xf32, #tpu.memory_space<vmem>>, vector<1x8x128xf32>,
    %88 = vector.broadcast %1 : f32 to vector<8x128xf32>
    %89 = arith.select %82, %88, %80 : vector<8x128xi1>, vector<8x128xf32>
    %c7 = arith.constant 7 : index
    %c0_40 = arith.constant 0 : index
    %c0_41 = arith.constant 0 : index
    %90 = vector.load %arg4[%c7, %c0_40, %c0_41] : memref<8x8x128xf32, #tpu.memory_space<vmem>>, vector<1x8x128xf32>
    %91 = vector.shape_cast %90 : vector<1x8x128xf32> to vector<8x128xf32>
    %92 = arith.addf %89, %91 : vector<8x128xf32>
    %93 = vector.broadcast %0 : f32 to vector<8x128xf32>
    %94 = arith.cmpf oge, %92, %93 : vector<8x128xf32>
    %95 = arith.extui %94 : vector<8x128xi1> to vector<8x128xi32>
    %96 = arith.sitofp %95 : vector<8x128xi32> to vector<8x128xf32>
    %c7_42 = arith.constant 7 : index
    %c0_43 = arith.constant 0 : index
    %c0_44 = arith.constant 0 : index
    %97 = vector.load %arg5[%c7_42, %c0_43, %c0_44] : memref<8x8x128xf32, #tpu.memory_space<vmem>>, vector<1x8x128xf32>
    %98 = vector.shape_cast %97 : vector<1x8x128xf32> to vector<8x128xf32>
    %99 = vector.shape_cast %96 : vector<8x128xf32> to vector<1x8x128xf32>
    tpu.vector_store %arg5[%c7_42, %c0_43, %c0_44], %99 {strides = array<i32>} : memref<8x8x128xf32, #tpu.memory_space<vmem>>, vector<1x8x128xf32>,
    %100 = vector.broadcast %1 : f32 to vector<8x128xf32>
    %101 = arith.select %94, %100, %92 : vector<8x128xi1>, vector<8x128xf32>
    %c0_45 = arith.constant 0 : index
    %c0_46 = arith.constant 0 : index
    %102 = vector.load %arg6[%c0_45, %c0_46] : memref<8x128xf32, #tpu.memory_space<vmem>>, vector<8x128xf32>
    tpu.vector_store %arg6[%c0_45, %c0_46], %101 {strides = array<i32>} : memref<8x128xf32, #tpu.memory_space<vmem>>, vector<8x128xf32>,
    return
  }
  func.func @transform_0(%arg0: i32, %arg1: i32, %arg2: i32) -> i32 {
    %c0_i32 = arith.constant 0 : i32
    %c0_i32_0 = arith.constant 0 : i32
    return %c0_i32 : i32
  }
  func.func @transform_1(%arg0: i32, %arg1: i32, %arg2: i32) -> (i32, i32, i32) {
    %c0_i32 = arith.constant 0 : i32
    return %arg2, %arg0, %arg1 : i32, i32, i32
  }
  func.func @transform_2(%arg0: i32, %arg1: i32, %arg2: i32) -> (i32, i32, i32) {
    %c0_i32 = arith.constant 0 : i32
    return %arg2, %arg0, %arg1 : i32, i32, i32
  }
}

</mosaic_0001>

<llo_original>
// kernel: tpu_custom_call.1
$region0: #{tpu_custom_call.1}
  #allocation0 [shape = 'u32[]', space=smem, size = 0x4, offset = 0x4, fixed_abs, tag = 'smem constant byte address 0x4 - core index']
  #allocation1 [shape = 'u32[72,128]{1,0:T(1,128)}', space=vmem, size = 0x9000, scoped, tag = 'internal scratch']
  #allocation2 [shape = 'f32[8,128]{1,0:T(8,128)}', space=vmem, size = 0x1000, scoped, tag = 'scratch operand']
  %s0 = inlined_call_operand.hbm [shape: f32[2], index: 0, kind: input, shape index: {}]
  %s1 = inlined_call_operand.hbm [shape: f32[8,8,256], index: 1, kind: input, shape index: {}]
  %s2 = inlined_call_operand.hbm [shape: f32[8,8,256], index: 2, kind: output, shape index: {}]
  %s3 = sld [smem:[#allocation0]]
  $region53: #{tpu_custom_call.1} parent=0
    _
  %s5 = ssub.s32 1, %s3
  %s6 = scalar_select 0, %s5, %s3
  $region1: #{tpu_custom_call.1} parent=0
    #allocation3 [shape = 'u8[512]{0}', space=smem, size = 0x200, scoped, tag = 'input window, operand 0, single buffered']
    #allocation4 [shape = 's32[2]{0}', space=sflag, size = 0x8, scoped, tag = 'scoped memory for tpu_custom_call.1']
    #allocation5 [shape = 's32[2]{0}', space=sflag, size = 0x8, scoped, tag = 'scoped memory for tpu_custom_call.1']
    #allocation6 [shape = 's32[2]{0}', space=sflag, size = 0x8, scoped, tag = 'scoped memory for tpu_custom_call.1']
    #allocation7 [shape = 'u8[65536]{0}', space=vmem, size = 0x10000, scoped, tag = 'input window, operand 1']
    #allocation8 [shape = 'u8[65536]{0}', space=vmem, size = 0x10000, scoped, tag = 'output window, operand 0']
    %7 = vsyncpa [#allocation6], 0
    %8 = vsyncpa [#allocation4], 0
    %s9 = scalar_lea.sflag [#allocation4], 1
    %10 = vsyncpa %s9, 0
    %11 = vsyncpa [#allocation5], 0
    %s12 = scalar_lea.sflag [#allocation5], 1
    %13 = vsyncpa %s12, 0
    loop: start=0, step=1, limit=4
    $region2: #{tpu_custom_call.1} parent=1 // loop_pre_header
      _
    $region3: #{tpu_custom_call.1} parent=1 // loop_header
      %s15 = sphi 0, %s19
      %p16 = scmp.ge.s32.totalorder %s15, 4
      %s22 = sphi 0, %s41
      %s23 = sphi 0, %s37
      %s24 = sphi 0, %s33
      %s25 = sphi 0, %s22
      %s26 = sphi 0, %s23
      %s27 = sphi 0, %s24
      %s28 = sphi 0, %s25
      %s29 = sphi 0, %s26
      %s30 = sphi 0, %s27
      %s42 = sphi 0, %s42
      %s44 = sphi 0, %s42
      %s45 = sphi 0, %s44
      %s59 = sphi 0, %s45
      %s69 = sphi 0, %s71
      %s72 = sphi 0, %s69
      %s73 = sphi 0, %s72
      %s89 = sphi 0, %s73
      %s99 = sphi 0, %s101
      %s102 = sphi 0, %s99
      %s103 = sphi 0, %s102
      %s119 = sphi 0, %s103
    $region4: #{tpu_custom_call.1} parent=1 // loop_header_branch
      %18 = sbr.rel (%p16) target = $region8
    $region5: #{tpu_custom_call.1} parent=1 // loop_body
      %s20 = ssub.s32 %s15, 1
      %s21 = ssub.s32 %s15, 2
      %s31 = sadd.s32 1, %s24
      %p32 = scmp.ge.s32.totalorder %s31, 1
      %s33 = scalar_select %p32, 0, %s31
      %s34 = sadd.s32 1, %s23
      %s35 = scalar_select %p32, %s34, %s23
      %p36 = scmp.ge.s32.totalorder %s35, 2
      %s37 = scalar_select %p36, 0, %s35
      %s38 = sadd.s32 1, %s22
      %s39 = scalar_select %p36, %s38, %s22
      %p40 = scmp.ge.s32.totalorder %s39, 1
      %s41 = scalar_select %p40, 0, %s39
      %s43 = sadd.s32 %s42, 1
      %p46 = scmp.eq.s32.totalorder %s15, 1
      %p47 = scmp.ne.s32.totalorder %s42, %s44
      %p48 = scmp.eq.s32.totalorder %s15, 0
      %p49 = por %p47, %p48
      %p50 = scmp.ne.s32.totalorder %s42, %s44
      %p51 = scmp.eq.s32.totalorder %s20, 1
      %p52 = por %p50, %p51
      %p53 = scmp.ne.s32.totalorder %s44, %s45
      %p54 = scmp.eq.s32.totalorder %s20, 0
      %p55 = por %p53, %p54
      %p56 = scmp.ne.s32.totalorder %s44, %s45
      %p57 = scmp.eq.s32.totalorder %s21, 1
      %p58 = por %p56, %p57
      %p60 = scmp.ne.s32.totalorder %s45, %s59
      %p61 = scmp.eq.s32.totalorder %s21, 0
      %p62 = por %p60, %p61
      %s63 = ssub.s32 %s24, %s33
      %s64 = ssub.s32 %s22, %s41
      %s65 = sor.u32 %s63, %s64
      %s66 = ssub.s32 %s23, %s37
      %s67 = sor.u32 %s65, %s66
      %p68 = scmp.eq.s32.totalorder %s67, 0
      %s70 = sadd.s32 %s69, 1
      %s71 = scalar_select %p68, %s69, %s70
      %p74 = pneg %p68
      %p75 = scmp.eq.s32.totalorder %s15, 1
      %p76 = por %p74, %p75
      %p77 = scmp.ne.s32.totalorder %s69, %s72
      %p78 = scmp.eq.s32.totalorder %s15, 0
      %p79 = por %p77, %p78
      %p80 = scmp.ne.s32.totalorder %s69, %s72
      %p81 = scmp.eq.s32.totalorder %s20, 1
      %p82 = por %p80, %p81
      %p83 = scmp.ne.s32.totalorder %s72, %s73
      %p84 = scmp.eq.s32.totalorder %s20, 0
      %p85 = por %p83, %p84
      %p86 = scmp.ne.s32.totalorder %s72, %s73
      %p87 = scmp.eq.s32.totalorder %s21, 1
      %p88 = por %p86, %p87
      %p90 = scmp.ne.s32.totalorder %s73, %s89
      %p91 = scmp.eq.s32.totalorder %s21, 0
      %p92 = por %p90, %p91
      %s93 = ssub.s32 %s24, %s33
      %s94 = ssub.s32 %s22, %s41
      %s95 = sor.u32 %s93, %s94
      %s96 = ssub.s32 %s23, %s37
      %s97 = sor.u32 %s95, %s96
      %p98 = scmp.eq.s32.totalorder %s97, 0
      %s100 = sadd.s32 %s99, 1
      %s101 = scalar_select %p98, %s99, %s100
      %p104 = pneg %p98
      %p105 = scmp.eq.s32.totalorder %s15, 1
      %p106 = por %p104, %p105
      %p107 = scmp.ne.s32.totalorder %s99, %s102
      %p108 = scmp.eq.s32.totalorder %s15, 0
      %p109 = por %p107, %p108
      %p110 = scmp.ne.s32.totalorder %s99, %s102
      %p111 = scmp.eq.s32.totalorder %s20, 1
      %p112 = por %p110, %p111
      %p113 = scmp.ne.s32.totalorder %s102, %s103
      %p114 = scmp.eq.s32.totalorder %s20, 0
      %p115 = por %p113, %p114
      %p116 = scmp.ne.s32.totalorder %s102, %s103
      %p117 = scmp.eq.s32.totalorder %s21, 1
      %p118 = por %p116, %p117
      %p120 = scmp.ne.s32.totalorder %s103, %s119
      %p121 = scmp.eq.s32.totalorder %s21, 0
      %p122 = por %p120, %p121
      %p123 = scmp.le.s32.totalorder 1, %s15
      %p124 = scmp.lt.s32.totalorder %s15, 3
      %p125 = pnand %p123, %p124
      %p126 = pneg %p125
      // Predicated region
      $region9: #{tpu_custom_call.1} parent=5 // pred_check
        _
      $region10: #{tpu_custom_call.1} parent=5 // pred_check_branch
        %128 = sbr.rel (%p125) target = $region12
      $region11: #{tpu_custom_call.1} parent=5 // pred_region
        %s129 = ssub.s32 %s15, 1
        // Predicated region
        $region13: #{tpu_custom_call.1} parent=11 // pred_check
          %p130 = pneg %p55
        $region14: #{tpu_custom_call.1} parent=11 // pred_check_branch
          %132 = sbr.rel (%p130) target = $region16
        $region15: #{tpu_custom_call.1} parent=11 // pred_region
          %134 = vsyncadd [#allocation6], 0
          %s136 = sshll.u32 %s0, 4
          %s137 = int_to_ptr.hbm [resolvable:$true] %s136
          %139 = dma.hbm_to_smem %s137, 16, [#allocation3], [#allocation6]
        $region16: #{tpu_custom_call.1} parent=11 // pred_fallthru
          _
      $region12: #{tpu_custom_call.1} parent=5 // pred_fallthru
        _
      %p140 = scmp.lt.s32.totalorder %s15, 2
      // Predicated region
      $region17: #{tpu_custom_call.1} parent=5 // pred_check
        %p141 = pneg %p140
      $region18: #{tpu_custom_call.1} parent=5 // pred_check_branch
        %143 = sbr.rel (%p141) target = $region20
      $region19: #{tpu_custom_call.1} parent=5 // pred_region
        // Predicated region
        $region21: #{tpu_custom_call.1} parent=19 // pred_check
          %p144 = pneg %p79
        $region22: #{tpu_custom_call.1} parent=19 // pred_check_branch
          %146 = sbr.rel (%p144) target = $region24
        $region23: #{tpu_custom_call.1} parent=19 // pred_region
          %s147 = sand.u32 %s69, 1
          %s148 = scalar_lea.sflag [#allocation4], %s147
          %s149 = sand.u32 %s69, 1
          %s150 = smul.addr %s149, 64
          %s151 = scalar_lea.vmem [#allocation7], %s150
          %s152 = smul.u32 8, %s24
          %154 = vsyncadd %s148, 0
          %s155 = smul.addr %s22, 2
          %s156 = sadd.s32 %s23, %s155
          %s157 = smul.addr %s152, 2
          %s158 = sadd.s32 %s156, %s157
          %s159 = smul.addr %s158, 8
          %s160 = scalar_lea.hbm %s1, %s159
          %s161 = sshll.u32 %s160, 4
          %s162 = int_to_ptr.hbm [resolvable:$true] %s161
          %s163 = sshll.u32 %s151, 4
          %s164 = int_to_ptr.vmem [resolvable:$true] %s163
          %169 = dma.hbm_to_vmem [thread:$0]  %s162, 1024, %s164, %s148, 256, 128, 8
        $region24: #{tpu_custom_call.1} parent=19 // pred_fallthru
          _
      $region20: #{tpu_custom_call.1} parent=5 // pred_fallthru
        _
      %p170 = scmp.le.s32.totalorder 1, %s15
      %p171 = scmp.lt.s32.totalorder %s15, 3
      %p172 = pnand %p170, %p171
      %p173 = pneg %p172
      // Predicated region
      $region25: #{tpu_custom_call.1} parent=5 // pred_check
        _
      $region26: #{tpu_custom_call.1} parent=5 // pred_check_branch
        %175 = sbr.rel (%p172) target = $region28
      $region27: #{tpu_custom_call.1} parent=5 // pred_region
        %s176 = ssub.s32 %s15, 1
        // Predicated region
        $region29: #{tpu_custom_call.1} parent=27 // pred_check
          %p177 = pneg %p55
        $region30: #{tpu_custom_call.1} parent=27 // pred_check_branch
          %179 = sbr.rel (%p177) target = $region32
        $region31: #{tpu_custom_call.1} parent=27 // pred_region
          %181 = dma.done [#allocation6], 16
        $region32: #{tpu_custom_call.1} parent=27 // pred_fallthru
          _
        %s182 = sand.u32 %s72, 1
        %s183 = scalar_lea.sflag [#allocation4], %s182
        %s184 = sand.u32 %s72, 1
        %s185 = smul.addr %s184, 64
        %s186 = scalar_lea.vmem [#allocation7], %s185
        // Predicated region
        $region33: #{tpu_custom_call.1} parent=27 // pred_check
          %p187 = pneg %p85
        $region34: #{tpu_custom_call.1} parent=27 // pred_check_branch
          %189 = sbr.rel (%p187) target = $region36
        $region35: #{tpu_custom_call.1} parent=27 // pred_region
          %191 = dma.done %s183, 1024
        $region36: #{tpu_custom_call.1} parent=27 // pred_fallthru
          _
        %192 = sfence
        %p193 = pneg %p55
        %p194 = pneg %p52
        %s195 = sand.u32 %s72, 1
        %s196 = scalar_lea.sflag [#allocation4], %s195
        %s197 = sand.u32 %s72, 1
        %s198 = smul.addr %s197, 64
        %s199 = scalar_lea.vmem [#allocation7], %s198
        %p200 = pneg %p85
        %p201 = pneg %p82
        %p202 = pneg %p115
        %p203 = pneg %p112
        %s204 = sand.u32 %s102, 1
        %s205 = scalar_lea.sflag [#allocation5], %s204
        %s206 = sand.u32 %s102, 1
        %s207 = smul.addr %s206, 64
        %s208 = scalar_lea.vmem [#allocation8], %s207
        %s209 = smul.u32 8, %s27
        %s210 = smul.u32 8, %s27
        %s211 = sld [smem:[#allocation3]]
        %s212 = sld [smem:[#allocation3 + $0x1]]
        %p213 = scmp.eq.s32.totalorder %s27, 0
        // Predicated region
        $region37: #{tpu_custom_call.1} parent=27 // pred_check
          %p214 = pneg %p213
        $region38: #{tpu_custom_call.1} parent=27 // pred_check_branch
          %216 = sbr.rel (%p214) target = $region40
        $region39: #{tpu_custom_call.1} parent=27 // pred_region
          %217 = vst [vmem:[#allocation2] sm:$0xff] 0.0
        $region40: #{tpu_custom_call.1} parent=27 // pred_fallthru
          _
        %v218 = vld [vmem:[#allocation2] sm:$0xff]
        %v219 = vld [vmem:[%s186] sm:$0xff]
        %v220 = vadd.f32 %v218, %v219
        %v221 = vstv %s211
        %vm222 = vcmp.ge.f32.partialorder %v220, %v221
        %v223 = vsel %vm222, 1, 0
        %v224 = vcvt.s32.f32 %v223
        %225 = vst [vmem:[%s208] sm:$0xff] %v224
        %v226 = vstv %s212
        %v227 = vsel %vm222, %v226, %v220
        %s228 = scalar_lea.vmem %s186, 8 [#allocation7]
        %v229 = vld [vmem:[%s228] sm:$0xff]
        %v230 = vadd.f32 %v227, %v229
        %vm231 = vcmp.ge.f32.partialorder %v230, %v221
        %v232 = vsel %vm231, 1, 0
        %v233 = vcvt.s32.f32 %v232
        %s234 = scalar_lea.vmem %s208, 8 [#allocation8]
        %235 = vst [vmem:[%s234] sm:$0xff] %v233
        %v236 = vsel %vm231, %v226, %v230
        %s237 = scalar_lea.vmem %s186, 16 [#allocation7]
        %v238 = vld [vmem:[%s237] sm:$0xff]
        %v239 = vadd.f32 %v236, %v238
        %vm240 = vcmp.ge.f32.partialorder %v239, %v221
        %v241 = vsel %vm240, 1, 0
        %v242 = vcvt.s32.f32 %v241
        %s243 = scalar_lea.vmem %s208, 16 [#allocation8]
        %244 = vst [vmem:[%s243] sm:$0xff] %v242
        %v245 = vsel %vm240, %v226, %v239
        %s246 = scalar_lea.vmem %s186, 24 [#allocation7]
        %v247 = vld [vmem:[%s246] sm:$0xff]
        %v248 = vadd.f32 %v245, %v247
        %vm249 = vcmp.ge.f32.partialorder %v248, %v221
        %v250 = vsel %vm249, 1, 0
        %v251 = vcvt.s32.f32 %v250
        %s252 = scalar_lea.vmem %s208, 24 [#allocation8]
        %253 = vst [vmem:[%s252] sm:$0xff] %v251
        %v254 = vsel %vm249, %v226, %v248
        %s255 = scalar_lea.vmem %s186, 32 [#allocation7]
        %v256 = vld [vmem:[%s255] sm:$0xff]
        %v257 = vadd.f32 %v254, %v256
        %vm258 = vcmp.ge.f32.partialorder %v257, %v221
        %v259 = vsel %vm258, 1, 0
        %v260 = vcvt.s32.f32 %v259
        %s261 = scalar_lea.vmem %s208, 32 [#allocation8]
        %262 = vst [vmem:[%s261] sm:$0xff] %v260
        %v263 = vsel %vm258, %v226, %v257
        %s264 = scalar_lea.vmem %s186, 40 [#allocation7]
        %v265 = vld [vmem:[%s264] sm:$0xff]
        %v266 = vadd.f32 %v263, %v265
        %vm267 = vcmp.ge.f32.partialorder %v266, %v221
        %v268 = vsel %vm267, 1, 0
        %v269 = vcvt.s32.f32 %v268
        %s270 = scalar_lea.vmem %s208, 40 [#allocation8]
        %271 = vst [vmem:[%s270] sm:$0xff] %v269
        %v272 = vsel %vm267, %v226, %v266
        %s273 = scalar_lea.vmem %s186, 48 [#allocation7]
        %v274 = vld [vmem:[%s273] sm:$0xff]
        %v275 = vadd.f32 %v272, %v274
        %vm276 = vcmp.ge.f32.partialorder %v275, %v221
        %v277 = vsel %vm276, 1, 0
        %v278 = vcvt.s32.f32 %v277
        %s279 = scalar_lea.vmem %s208, 48 [#allocation8]
        %280 = vst [vmem:[%s279] sm:$0xff] %v278
        %v281 = vsel %vm276, %v226, %v275
        %s282 = scalar_lea.vmem %s186, 56 [#allocation7]
        %v283 = vld [vmem:[%s282] sm:$0xff]
        %v284 = vadd.f32 %v281, %v283
        %vm285 = vcmp.ge.f32.partialorder %v284, %v221
        %v286 = vsel %vm285, 1, 0
        %v287 = vcvt.s32.f32 %v286
        %s288 = scalar_lea.vmem %s208, 56 [#allocation8]
        %289 = vst [vmem:[%s288] sm:$0xff] %v287
        %v290 = vsel %vm285, %v226, %v284
        %291 = vst [vmem:[#allocation2] sm:$0xff] %v290
        %s292 = sand.u32 %s102, 1
        %s293 = scalar_lea.sflag [#allocation5], %s292
        %s294 = sand.u32 %s102, 1
        %s295 = smul.addr %s294, 64
        %s296 = scalar_lea.vmem [#allocation8], %s295
        // Predicated region
        $region41: #{tpu_custom_call.1} parent=27 // pred_check
          %p297 = pneg %p112
        $region42: #{tpu_custom_call.1} parent=27 // pred_check_branch
          %299 = sbr.rel (%p297) target = $region44
        $region43: #{tpu_custom_call.1} parent=27 // pred_region
          %s300 = smul.u32 8, %s27
          %302 = vsyncadd %s293, 0
          %s303 = smul.addr %s25, 2
          %s304 = sadd.s32 %s26, %s303
          %s305 = smul.addr %s300, 2
          %s306 = sadd.s32 %s304, %s305
          %s307 = smul.addr %s306, 8
          %s308 = scalar_lea.hbm %s2, %s307
          %s309 = sshll.u32 %s296, 4
          %s310 = int_to_ptr.vmem [resolvable:$true] %s309
          %s311 = sshll.u32 %s308, 4
          %s312 = int_to_ptr.hbm [resolvable:$true] %s311
          %317 = dma.vmem_to_hbm [thread:$0]  %s310, 1024, %s312, %s293, 128, 256, 8
        $region44: #{tpu_custom_call.1} parent=27 // pred_fallthru
          _
      $region28: #{tpu_custom_call.1} parent=5 // pred_fallthru
        _
      %p318 = scmp.le.s32.totalorder 2, %s15
      // Predicated region
      $region45: #{tpu_custom_call.1} parent=5 // pred_check
        %p319 = pneg %p318
      $region46: #{tpu_custom_call.1} parent=5 // pred_check_branch
        %321 = sbr.rel (%p319) target = $region48
      $region47: #{tpu_custom_call.1} parent=5 // pred_region
        %s322 = ssub.s32 %s15, 2
        // Predicated region
        $region49: #{tpu_custom_call.1} parent=47 // pred_check
          %p323 = pneg %p118
        $region50: #{tpu_custom_call.1} parent=47 // pred_check_branch
          %325 = sbr.rel (%p323) target = $region52
        $region51: #{tpu_custom_call.1} parent=47 // pred_region
          %s326 = sand.u32 %s103, 1
          %s327 = scalar_lea.sflag [#allocation5], %s326
          %s328 = sand.u32 %s103, 1
          %s329 = smul.addr %s328, 64
          %s330 = scalar_lea.vmem [#allocation8], %s329
          %332 = dma.done %s327, 1024
        $region52: #{tpu_custom_call.1} parent=47 // pred_fallthru
          _
      $region48: #{tpu_custom_call.1} parent=5 // pred_fallthru
        _
    $region6: #{tpu_custom_call.1} parent=1 // loop_footer
      %s19 = sadd.s32 1, %s15
    $region7: #{tpu_custom_call.1} parent=1 // loop_footer_branch
      %14 = sbr.rel target = $region3
    $region8: #{tpu_custom_call.1} parent=1 // loop_exit
      _
    %333 = vsyncpa [#allocation4], 1
    %s334 = scalar_lea.sflag [#allocation4], 1
    %335 = vsyncpa %s334, 1
    %336 = vsyncpa [#allocation5], 1
    %s337 = scalar_lea.sflag [#allocation5], 1
    %338 = vsyncpa %s337, 1
    %339 = vsyncpa [#allocation6], 1
    %s340 = scalar_lea.sflag [#allocation6], 1
    %341 = vsyncpa %s340, 1

</llo_original>
